<compile_context>
chip_gen: v5e
topology: v5e:2x2
jax: 0.10.0
libtpu: 0.0.40
codegen_flags: <defaults>
</compile_context>

<pallas_src>
import functools

import jax
import jax.numpy as jnp
from jax.experimental import pallas as pl
from jax.experimental.pallas import tpu as pltpu


def _round_up(x: int, m: int) -> int:
    return ((x + m - 1) // m) * m


def _make_ols_kernel(num_classes: int, alpha: float, batch: int, tb: int):
    """Kernel with all static config baked in as Python scalars (no captured tracers)."""
    num_classes = int(num_classes)
    alpha = float(alpha)
    batch = int(batch)
    tb = int(tb)

    def kernel(logits_ref, targets_ref, out_ref):
        i = pl.program_id(0)

        logits = logits_ref[...]                                   # (C, TB) f32
        t = targets_ref[...]                                       # (1, TB) f32

        # class index along sublanes
        cls = jax.lax.broadcasted_iota(jnp.int32, (num_classes, tb), 0).astype(jnp.float32)
        dist = cls - t                                             # (C, TB)
        neg_ad2 = (-alpha) * dist * dist                           # = log(exp(-alpha*d^2))
        st = jnp.exp(neg_ad2)                                      # un-normalized soft targets
        denom = jnp.sum(st, axis=0, keepdims=True)                 # (1, TB)

        # log_softmax over the class (sublane) axis
        m = jnp.max(logits, axis=0, keepdims=True)                 # (1, TB)
        e = jnp.exp(logits - m)
        s = jnp.sum(e, axis=0, keepdims=True)                      # (1, TB)
        log_probs = logits - m - jnp.log(s)                        # (C, TB)

        # KL(soft || softmax(logits)) per sample, using sum_c soft = 1:
        #   sum_c (st/denom)*(neg_ad2 - log(denom) - log_probs)
        # = (1/denom) * sum_c st*(neg_ad2 - log_probs) - log(denom)
        inner = jnp.sum(st * (neg_ad2 - log_probs), axis=0, keepdims=True)   # (1, TB)
        per_sample = inner * pl.reciprocal(denom) - jnp.log(denom)           # (1, TB)

        # mask padded batch lanes
        lane = jax.lax.broadcasted_iota(jnp.int32, (1, tb), 1) + i * tb
        per_sample = jnp.where(lane < batch, per_sample, 0.0)

        out_ref[...] = per_sample

    return kernel


@functools.partial(jax.jit, static_argnames=("num_classes", "alpha", "block_lanes"))
def ordinal_label_smoothing_loss(logits, targets, num_classes: int,
                                 alpha: float = 0.1, block_lanes: int = 2048):
    """Pallas forward pass of OrdinalLabelSmoothingLoss.

    logits:  (B, num_classes) float32
    targets: (B,)             int (or float) class indices
    returns: scalar float32 loss ('batchmean' KL divergence)
    """
    B, C = logits.shape
    assert C == num_classes

    # batch-on-lanes tile: multiple of 128 lanes, capped by a conservative VMEM
    # budget (fits v7x's smaller scoped VMEM even for large C; double-buffered).
    c_sub = _round_up(max(C, 8), 8)
    vmem_budget = 16 * 1024 * 1024
    max_tb = max(128, (vmem_budget // (2 * c_sub * 4)) // 128 * 128)
    tb = min(_round_up(B, 128), _round_up(max(block_lanes, 128), 128), max_tb)
    b_pad = _round_up(B, tb)
    grid = (b_pad // tb,)

    # transposed, lane-dense layout: classes on sublanes, samples on lanes
    logits_t = jnp.pad(logits.astype(jnp.float32).T, ((0, 0), (0, b_pad - B)))     # (C, Bp)
    targets_t = jnp.pad(targets.astype(jnp.float32).reshape(1, B),
                        ((0, 0), (0, b_pad - B)))                                  # (1, Bp)

    kernel = _make_ols_kernel(C, alpha, B, tb)

    per_sample = pl.pallas_call(
        kernel,
        out_shape=jax.ShapeDtypeStruct((1, b_pad), jnp.float32),
        grid=grid,
        in_specs=[
            pl.BlockSpec((C, tb), lambda i: (0, i)),   # block 2nd-to-last dim == full C
            pl.BlockSpec((1, tb), lambda i: (0, i)),
        ],
        out_specs=pl.BlockSpec((1, tb), lambda i: (0, i)),
        compiler_params=pltpu.CompilerParams(
            dimension_semantics=("parallel",)),        # disjoint output tiles -> megacore OK
    )(logits_t, targets_t)

    return jnp.sum(per_sample) / B                     # tiny (1, Bp) reduce + 'batchmean'


if __name__ == "__main__":
    num_classes = 10
    alpha = 0.1

    def reference(logits, targets):
        cr = jnp.arange(num_classes, dtype=jnp.float32)
        t = targets.astype(jnp.float32)[:, None]
        dist = cr[None, :] - t
        st = jnp.exp(-alpha * dist ** 2)
        st = st / jnp.sum(st, axis=1, keepdims=True)
        logp = jax.nn.log_softmax(logits, axis=1)
        return jnp.sum(st * (jnp.log(st) - logp)) / logits.shape[0]

    key = jax.random.PRNGKey(0)
    # (batch=20) exercises lane masking with a single tile;
    # (batch=300, block_lanes=128) exercises multiple grid tiles + masking.
    for batch, block_lanes in ((20, 512), (300, 128)):
        key, k_l, k_t = jax.random.split(key, 3)
        logits = jax.random.normal(k_l, (batch, num_classes), jnp.float32)
        targets = jax.random.randint(k_t, (batch,), 0, num_classes, jnp.int32)

        loss = jax.block_until_ready(
            ordinal_label_smoothing_loss(logits, targets, num_classes,
                                         alpha=alpha, block_lanes=block_lanes))
        ref = reference(logits, targets)

        assert loss.shape == ()
        assert jnp.allclose(loss, ref, atol=1e-5, rtol=1e-4), (batch, loss, ref)

    print("KERNEL_OK")
</pallas_src>

<mosaic_0001>
module attributes {stable_mosaic.version = 11 : i64} {
  func.func @kernel(%arg0: i32, %arg1: memref<10x128xf32, #tpu.memory_space<vmem>>, %arg2: memref<1x128xf32, #tpu.memory_space<vmem>>, %arg3: memref<1x128xf32, #tpu.memory_space<vmem>>) attributes {dimension_semantics = [#tpu.dimension_semantics<parallel>], iteration_bounds = array<i64: 1>, scalar_prefetch = 0 : i64, scratch_operands = 0 : i64, tpu.core_type = #tpu.core_type<tc>, window_params = [{transform_indices = @transform_0, window_bounds = array<i64: 10, 128>}, {transform_indices = @transform_1, window_bounds = array<i64: 1, 128>}, {transform_indices = @transform_2, window_bounds = array<i64: 1, 128>}]} {
    %c0 = arith.constant 0 : index
    %c0_0 = arith.constant 0 : index
    %0 = vector.load %arg1[%c0, %c0_0] : memref<10x128xf32, #tpu.memory_space<vmem>>, vector<10x128xf32>
    %c0_1 = arith.constant 0 : index
    %c0_2 = arith.constant 0 : index
    %1 = vector.load %arg2[%c0_1, %c0_2] : memref<1x128xf32, #tpu.memory_space<vmem>>, vector<1x128xf32>
    %2 = tpu.iota {dimensions = array<i32: 0>} : vector<10x128xi32>
    %3 = arith.sitofp %2 : vector<10x128xi32> to vector<10x128xf32>
    %4 = vector.broadcast %1 : vector<1x128xf32> to vector<10x128xf32>
    %5 = arith.subf %3, %4 : vector<10x128xf32>
    %cst = arith.constant -1.000000e-01 : f32
    %6 = vector.broadcast %cst : f32 to vector<10x128xf32>
    %7 = arith.mulf %6, %5 : vector<10x128xf32>
    %8 = arith.mulf %7, %5 : vector<10x128xf32>
    %9 = math.exp %8 : vector<10x128xf32>
    %cst_3 = arith.constant dense<0.000000e+00> : vector<128xf32>
    %10 = vector.multi_reduction <add>, %9, %cst_3 [0] : vector<10x128xf32> to vector<128xf32>
    %11 = vector.shape_cast %10 : vector<128xf32> to vector<1x128xf32>
    %cst_4 = arith.constant dense<0xFF800000> : vector<128xf32>
    %12 = vector.multi_reduction <maximumf>, %0, %cst_4 [0] : vector<10x128xf32> to vector<128xf32>
    %13 = vector.shape_cast %12 : vector<128xf32> to vector<1x128xf32>
    %14 = vector.broadcast %13 : vector<1x128xf32> to vector<10x128xf32>
    %15 = arith.subf %0, %14 : vector<10x128xf32>
    %16 = math.exp %15 : vector<10x128xf32>
    %cst_5 = arith.constant dense<0.000000e+00> : vector<128xf32>
    %17 = vector.multi_reduction <add>, %16, %cst_5 [0] : vector<10x128xf32> to vector<128xf32>
    %18 = vector.shape_cast %17 : vector<128xf32> to vector<1x128xf32>
    %19 = vector.broadcast %13 : vector<1x128xf32> to vector<10x128xf32>
    %20 = arith.subf %0, %19 : vector<10x128xf32>
    %21 = math.log %18 : vector<1x128xf32>
    %22 = vector.broadcast %21 : vector<1x128xf32> to vector<10x128xf32>
    %23 = arith.subf %20, %22 : vector<10x128xf32>
    %24 = arith.subf %8, %23 : vector<10x128xf32>
    %25 = arith.mulf %9, %24 : vector<10x128xf32>
    %cst_6 = arith.constant dense<0.000000e+00> : vector<128xf32>
    %26 = vector.multi_reduction <add>, %25, %cst_6 [0] : vector<10x128xf32> to vector<128xf32>
    %27 = vector.shape_cast %26 : vector<128xf32> to vector<1x128xf32>
    %28 = tpu.reciprocal %11 : vector<1x128xf32> -> vector<1x128xf32>
    %29 = arith.mulf %27, %28 : vector<1x128xf32>
    %30 = math.log %11 : vector<1x128xf32>
    %31 = arith.subf %29, %30 : vector<1x128xf32>
    %32 = tpu.iota {dimensions = array<i32: 1>} : vector<1x128xi32>
    %c128_i32 = arith.constant 128 : i32
    %33 = arith.muli %arg0, %c128_i32 : i32
    %34 = vector.broadcast %33 : i32 to vector<1x128xi32>
    %35 = arith.addi %32, %34 : vector<1x128xi32>
    %c20_i32 = arith.constant 20 : i32
    %36 = vector.broadcast %c20_i32 : i32 to vector<1x128xi32>
    %37 = arith.cmpi slt, %35, %36 : vector<1x128xi32>
    %cst_7 = arith.constant 0.000000e+00 : f32
    %38 = vector.broadcast %cst_7 : f32 to vector<1x128xf32>
    %39 = arith.select %37, %31, %38 : vector<1x128xi1>, vector<1x128xf32>
    %c0_8 = arith.constant 0 : index
    %c0_9 = arith.constant 0 : index
    %40 = vector.load %arg3[%c0_8, %c0_9] : memref<1x128xf32, #tpu.memory_space<vmem>>, vector<1x128xf32>
    tpu.vector_store %arg3[%c0_8, %c0_9], %39 {strides = array<i32>} : memref<1x128xf32, #tpu.memory_space<vmem>>, vector<1x128xf32>,
    return
  }
  func.func @transform_0(%arg0: i32) -> (i32, i32) {
    %c0_i32 = arith.constant 0 : i32
    %c0_i32_0 = arith.constant 0 : i32
    return %c0_i32, %arg0 : i32, i32
  }
  func.func @transform_1(%arg0: i32) -> (i32, i32) {
    %c0_i32 = arith.constant 0 : i32
    %c0_i32_0 = arith.constant 0 : i32
    return %c0_i32, %arg0 : i32, i32
  }
  func.func @transform_2(%arg0: i32) -> (i32, i32) {
    %c0_i32 = arith.constant 0 : i32
    %c0_i32_0 = arith.constant 0 : i32
    return %c0_i32, %arg0 : i32, i32
  }
}

</mosaic_0001>

<llo_original>
// kernel: ordinal_label_smoothing_loss.1
$region0: #{ordinal_label_smoothing_loss.1}
  #allocation0 [shape = 'u32[]', space=smem, size = 0x4, offset = 0x4, fixed_abs, tag = 'smem constant byte address 0x4 - core index']
  #allocation1 [shape = 'u32[72,128]{1,0:T(1,128)}', space=vmem, size = 0x9000, scoped, tag = 'internal scratch']
  %s0 = inlined_call_operand.vmem [shape: f32[10,128], index: 0, kind: input, shape index: {}]
  %s1 = inlined_call_operand.vmem [shape: f32[1,128], index: 1, kind: input, shape index: {}]
  %s2 = inlined_call_operand.vmem [shape: f32[1,128], index: 2, kind: output, shape index: {}]
  %s3 = sld [smem:[#allocation0]]
  $region18: #{ordinal_label_smoothing_loss.1} parent=0
    _
  %s5 = ssub.s32 1, %s3
  %s6 = scalar_select 0, %s5, %s3
  // Predicated region
  $region2: #{ordinal_label_smoothing_loss.1} parent=0 // pred_check
    _
  $region3: #{ordinal_label_smoothing_loss.1} parent=0 // pred_check_branch
    %8 = sbr.rel (0) target = $region5
  $region4: #{ordinal_label_smoothing_loss.1} parent=0 // pred_region
    _
  $region5: #{ordinal_label_smoothing_loss.1} parent=0 // pred_fallthru
    _
  // Predicated region
  $region6: #{ordinal_label_smoothing_loss.1} parent=0 // pred_check
    _
  $region7: #{ordinal_label_smoothing_loss.1} parent=0 // pred_check_branch
    %10 = sbr.rel (0) target = $region9
  $region8: #{ordinal_label_smoothing_loss.1} parent=0 // pred_region
    _
  $region9: #{ordinal_label_smoothing_loss.1} parent=0 // pred_fallthru
    _
  %v11 = vld [vmem:[%s0] sm:$0xff]
  %v12 = vld [vmem:[%s0 + $0x8] sm:$0x3]
  %v13 = vld [vmem:[%s1] sm:$0x1]
  %v14 = vlaneseq
  %v15 = vshrl.u32 %v14, 7
  %v16 = vadd.s32 %v15, 8
  %v17 = vcvt.s32.f32 %v15
  %v18 = vcvt.s32.f32 %v16
  %v20 = vperm.slane %v13, 0
  %v22 = vsub.f32 %v17, %v20
  %v23 = vsub.f32 %v18, %v20
  %v24 = vmul.f32 %v22, -0.1
  %v25 = vmul.f32 %v23, -0.1
  %v26 = vmul.f32 %v24, %v22
  %v27 = vmul.f32 %v25, %v23
  %v28 = vmul.f32 %v26, 1.442695
  %v29 = vpow.pop %v28
  %v30 = vmul.f32 %v27, 1.442695
  %v31 = vpow.pop %v30
  %vm32 = vcmask 1041408
  %v33 = vsel %vm32, %v31, 0.0
  %v34 = vadd.f32 %v29, %v33
  %v35 = vrot.slane %v34, 4
  %v36 = vadd.f32 %v34, %v35
  %v37 = vrot.slane %v36, 2
  %v38 = vadd.f32 %v36, %v37
  %v39 = vrot.slane %v38, 1
  %v40 = vadd.f32 %v38, %v39
  %v41 = vsel %vm32, %v12, -inf
  %v42 = vmax.f32 %v11, %v41
  %v43 = vrot.slane %v42, 4
  %v44 = vmax.f32 %v42, %v43
  %v45 = vrot.slane %v44, 2
  %v46 = vmax.f32 %v44, %v45
  %v47 = vrot.slane %v46, 1
  %v48 = vmax.f32 %v46, %v47
  %v49 = vsub.f32 %v11, %v48
  %v50 = vsub.f32 %v12, %v48
  %v51 = vmul.f32 %v49, 1.442695
  %v52 = vpow.pop %v51
  %v53 = vmul.f32 %v50, 1.442695
  %v54 = vpow.pop %v53
  %v55 = vsel %vm32, %v54, 0.0
  %v56 = vadd.f32 %v52, %v55
  %v57 = vrot.slane %v56, 4
  %v58 = vadd.f32 %v56, %v57
  %v59 = vrot.slane %v58, 2
  %v60 = vadd.f32 %v58, %v59
  %v61 = vrot.slane %v60, 1
  %v62 = vadd.f32 %v60, %v61
  %v63 = vlog2.pop %v62
  %v64 = vmul.f32 %v63, 0.6931472
  %v65 = vsub.f32 %v49, %v64
  %v66 = vsub.f32 %v50, %v64
  %v67 = vsub.f32 %v26, %v65
  %v68 = vsub.f32 %v27, %v66
  %v69 = vmul.f32 %v29, %v67
  %v70 = vmul.f32 %v31, %v68
  %v71 = vsel %vm32, %v70, 0.0
  %v72 = vadd.f32 %v69, %v71
  %v73 = vrot.slane %v72, 4
  %v74 = vadd.f32 %v72, %v73
  %v75 = vrot.slane %v74, 2
  %v76 = vadd.f32 %v74, %v75
  %v77 = vrot.slane %v76, 1
  %v78 = vadd.f32 %v76, %v77
  %v79 = vrcp.pop %v40
  %v80 = vmul.f32 %v40, %v79
  %v81 = vsub.f32 1.0, %v80
  %v82 = vmul.f32 %v79, %v81
  %v83 = vadd.f32 %v79, %v82
  %vm84 = vweird.f32 %v40
  %vm85 = vweird.f32 %v79
  %vm86 = vmor %vm84, %vm85
  %v87 = vsel %vm86, %v79, %v83
  %v88 = vand.u32 2147483647, %v40
  %vm89 = vcmp.eq.f32.partialorder %v88, 8.507059e+37
  %v90 = vand.u32 %v40, 2147483648
  %v91 = vor.u32 1.1754944e-38, %v90
  %v92 = vsel %vm89, %v91, %v87
  %v93 = vmul.f32 %v78, %v92
  %v94 = vlog2.pop %v40
  %v95 = vmul.f32 %v94, 0.6931472
  %v96 = vsub.f32 %v93, %v95
  %v97 = vlaneseq
  %v98 = vand.u32 %v97, 127
  %s99 = smul.u32 0, 128
  %v100 = vstv %s99
  %v101 = vadd.s32 %v98, %v100
  %vm102 = vcmp.lt.s32.totalorder %v101, 20
  %v103 = vsel %vm102, %v96, 0.0
  %104 = vst [vmem:[%s2] sm:$0x1] %v103
  // Predicated region
  $region10: #{ordinal_label_smoothing_loss.1} parent=0 // pred_check
    _
  $region11: #{ordinal_label_smoothing_loss.1} parent=0 // pred_check_branch
    %106 = sbr.rel (0) target = $region13
  $region12: #{ordinal_label_smoothing_loss.1} parent=0 // pred_region
    _
  $region13: #{ordinal_label_smoothing_loss.1} parent=0 // pred_fallthru
    _
  // Predicated region
  $region14: #{ordinal_label_smoothing_loss.1} parent=0 // pred_check
    _
  $region15: #{ordinal_label_smoothing_loss.1} parent=0 // pred_check_branch
    %108 = sbr.rel (0) target = $region17
  $region16: #{ordinal_label_smoothing_loss.1} parent=0 // pred_region
    _
  $region17: #{ordinal_label_smoothing_loss.1} parent=0 // pred_fallthru
    _

</llo_original>
